<compile_context>
chip_gen: v7x
topology: tpu7x:2x2x1
jax: 0.10.0
libtpu: 0.0.40
codegen_flags: <defaults>
</compile_context>

<pallas_src>
import math
import jax
import jax.numpy as jnp
from jax.experimental import pallas as pl
from jax.experimental.pallas import tpu as pltpu


def _round_up(n: int, m: int) -> int:
    return ((n + m - 1) // m) * m


def _cdiv(a: int, b: int) -> int:
    return -(-a // b)


def adapter_kernel(x_ref, wa_t_ref, wb_t_ref, o_ref):
    # x_ref:    (tm, in_features)   x.dtype (f32) -- one streamed row tile
    # wa_t_ref: (in_features, h_pad) bf16          -- conv_A.weight.T, hidden zero-padded to 128
    # wb_t_ref: (h_pad, in_features) bf16          -- conv_B.weight.T, hidden zero-padded to 128
    # o_ref:    (tm, in_features)   x.dtype
    x = x_ref[...].astype(wa_t_ref.dtype)                                # bf16 cast in-kernel
    h = jnp.dot(x, wa_t_ref[...], preferred_element_type=jnp.float32)   # (tm, h_pad) f32
    h = jnp.maximum(h, 0.0)                                              # ReLU in f32
    y = jnp.dot(h.astype(wb_t_ref.dtype), wb_t_ref[...],
                preferred_element_type=jnp.float32)                      # (tm, in_features) f32
    o_ref[...] = y.astype(o_ref.dtype)


def prepare_adapter_weights(w_a, w_b, compute_dtype=jnp.bfloat16):
    """One-time weight prep (hoisted out of the per-call path).

    w_a: (hidden_dim, in_features)  -- conv_A.weight
    w_b: (in_features, hidden_dim)  -- conv_B.weight
    Returns (wa_t, wb_t) ready for adapter_forward.
    """
    hidden_dim, in_features = w_a.shape
    assert w_b.shape == (in_features, hidden_dim)
    h_pad = _round_up(hidden_dim, 128)   # minimum lane-dense width for the MXU

    wa_t = jnp.zeros((in_features, h_pad), compute_dtype)
    wa_t = wa_t.at[:, :hidden_dim].set(w_a.T.astype(compute_dtype))
    wb_t = jnp.zeros((h_pad, in_features), compute_dtype)
    wb_t = wb_t.at[:hidden_dim, :].set(w_b.T.astype(compute_dtype))
    return wa_t, wb_t


def adapter_forward(x, wa_t, wb_t, *, tm=1024):
    """x: [..., in_features]; wa_t/wb_t from prepare_adapter_weights."""
    orig_shape = x.shape
    in_features = x.shape[-1]
    h_pad = wa_t.shape[1]
    assert wa_t.shape == (in_features, h_pad)
    assert wb_t.shape == (h_pad, in_features)

    x2d = x.reshape(-1, in_features)
    M = x2d.shape[0]

    # Row tile: multiple of 8 sublanes.  Clamp so that (a) we never exceed one
    # padded block when M is tiny, and (b) grid_m >= 2 whenever possible so the
    # "parallel" axis can shard across both TensorCores (v7x).
    tm = max(8, (int(tm) // 8) * 8)
    if M > 8:
        tm = min(tm, _round_up(_cdiv(M, 2), 8))
    tm = min(tm, _round_up(M, 8))
    grid_m = _cdiv(M, tm)

    itemsize_in = jnp.dtype(x.dtype).itemsize
    cost = pl.CostEstimate(
        flops=2 * M * in_features * h_pad * 2,          # two matmuls
        transcendentals=0,
        bytes_accessed=(M * in_features * itemsize_in           # x read
                        + wa_t.size * 2 + wb_t.size * 2         # bf16 weights
                        + M * in_features * itemsize_in),       # output write
    )

    out = pl.pallas_call(
        adapter_kernel,
        out_shape=jax.ShapeDtypeStruct((M, in_features), x.dtype),
        grid_spec=pltpu.PrefetchScalarGridSpec(
            num_scalar_prefetch=0,
            grid=(grid_m,),
            in_specs=[
                # x: streamed, double-buffered row tiles (partial last block masked).
                pl.BlockSpec((tm, in_features), lambda i: (i, 0)),
                # Weights: whole-array resident in VMEM, outside the pipeline.
                pl.BlockSpec(memory_space=pltpu.MemorySpace.VMEM),
                pl.BlockSpec(memory_space=pltpu.MemorySpace.VMEM),
            ],
            out_specs=pl.BlockSpec((tm, in_features), lambda i: (i, 0)),
        ),
        compiler_params=pltpu.CompilerParams(
            dimension_semantics=("parallel",),
        ),
        cost_estimate=cost,
    )(x2d, wa_t, wb_t)

    return out.reshape(orig_shape)


def xavier_uniform(key, shape, dtype=jnp.float32):
    # nn.init.xavier_uniform_ for a Linear weight of shape (out_features, in_features)
    fan_out, fan_in = shape
    bound = math.sqrt(6.0 / (fan_in + fan_out))
    return jax.random.uniform(key, shape, dtype, minval=-bound, maxval=bound)


if __name__ == "__main__":
    # Module defaults: in_features=768, hidden_dim=8; small batch*seq.
    batch, seq, in_features, hidden_dim = 2, 8, 768, 8

    key = jax.random.PRNGKey(0)
    kx, ka, kb = jax.random.split(key, 3)

    x = jax.random.normal(kx, (batch, seq, in_features), dtype=jnp.float32)
    w_a = xavier_uniform(ka, (hidden_dim, in_features))   # conv_A.weight
    w_b = xavier_uniform(kb, (in_features, hidden_dim))   # conv_B.weight

    # One-time weight prep (hoisted out of the forward path).
    wa_t, wb_t = prepare_adapter_weights(w_a, w_b)
    wa_t, wb_t = jax.block_until_ready((wa_t, wb_t))

    y = adapter_forward(x, wa_t, wb_t)
    y = jax.block_until_ready(y)

    # Pure-JAX reference using the same bf16-operand / f32-accumulate path.
    bf = jnp.bfloat16
    h_ref = jnp.dot(x.reshape(-1, in_features).astype(bf), w_a.T.astype(bf),
                    preferred_element_type=jnp.float32)
    h_ref = jnp.maximum(h_ref, 0.0)
    ref = jnp.dot(h_ref.astype(bf), w_b.T.astype(bf),
                  preferred_element_type=jnp.float32).reshape(x.shape)

    assert y.shape == x.shape
    assert y.dtype == x.dtype
    assert jnp.allclose(y, ref.astype(x.dtype), atol=2e-2, rtol=2e-2), "mismatch vs reference"

    print("KERNEL_OK")
</pallas_src>

<mosaic_0001>
module attributes {stable_mosaic.version = 11 : i64} {
  func.func @adapter_kernel(%arg0: i32, %arg1: memref<8x768xf32, #tpu.memory_space<vmem>>, %arg2: memref<768x128xbf16, #tpu.memory_space<vmem>>, %arg3: memref<128x768xbf16, #tpu.memory_space<vmem>>, %arg4: memref<8x768xf32, #tpu.memory_space<vmem>>) attributes {dimension_semantics = [#tpu.dimension_semantics<parallel>], iteration_bounds = array<i64: 2>, scalar_prefetch = 0 : i64, scratch_operands = 0 : i64, tpu.core_type = #tpu.core_type<tc>, window_params = [{transform_indices = @transform_0, window_bounds = array<i64: 8, 768>}, {pipeline_mode = #tpu.pipeline_mode<synchronous>, transform_indices = @transform_1, window_bounds = array<i64: 768, 128>}, {pipeline_mode = #tpu.pipeline_mode<synchronous>, transform_indices = @transform_2, window_bounds = array<i64: 128, 768>}, {transform_indices = @transform_3, window_bounds = array<i64: 8, 768>}]} {
    %c0 = arith.constant 0 : index
    %c0_0 = arith.constant 0 : index
    %0 = vector.load %arg1[%c0, %c0_0] : memref<8x768xf32, #tpu.memory_space<vmem>>, vector<8x768xf32>
    %1 = arith.truncf %0 : vector<8x768xf32> to vector<8x768xbf16>
    %c0_1 = arith.constant 0 : index
    %c0_2 = arith.constant 0 : index
    %2 = vector.load %arg2[%c0_1, %c0_2] : memref<768x128xbf16, #tpu.memory_space<vmem>>, vector<768x128xbf16>
    %cst = arith.constant dense<0.000000e+00> : vector<8x128xf32>
    %3 = tpu.matmul %1, %2, %cst {dimension_numbers = #tpu.dot_dimension_numbers<[1], [0], [0], [1], [0, 0, 1, 1], [], []>} : vector<8x768xbf16>, vector<768x128xbf16>, vector<8x128xf32> -> vector<8x128xf32>
    %cst_3 = arith.constant 0.000000e+00 : f32
    %4 = vector.broadcast %cst_3 : f32 to vector<8x128xf32>
    %5 = arith.maximumf %3, %4 : vector<8x128xf32>
    %6 = arith.truncf %5 : vector<8x128xf32> to vector<8x128xbf16>
    %c0_4 = arith.constant 0 : index
    %c0_5 = arith.constant 0 : index
    %7 = vector.load %arg3[%c0_4, %c0_5] : memref<128x768xbf16, #tpu.memory_space<vmem>>, vector<128x768xbf16>
    %cst_6 = arith.constant dense<0.000000e+00> : vector<8x768xf32>
    %8 = tpu.matmul %6, %7, %cst_6 {dimension_numbers = #tpu.dot_dimension_numbers<[1], [0], [0], [1], [0, 0, 1, 1], [], []>} : vector<8x128xbf16>, vector<128x768xbf16>, vector<8x768xf32> -> vector<8x768xf32>
    %c0_7 = arith.constant 0 : index
    %c0_8 = arith.constant 0 : index
    %9 = vector.load %arg4[%c0_7, %c0_8] : memref<8x768xf32, #tpu.memory_space<vmem>>, vector<8x768xf32>
    tpu.vector_store %arg4[%c0_7, %c0_8], %8 {strides = array<i32>} : memref<8x768xf32, #tpu.memory_space<vmem>>, vector<8x768xf32>,
    return
  }
  func.func @transform_0(%arg0: i32) -> (i32, i32) {
    %c0_i32 = arith.constant 0 : i32
    %c0_i32_0 = arith.constant 0 : i32
    return %arg0, %c0_i32 : i32, i32
  }
  func.func @transform_1(%arg0: i32) -> (i32, i32) {
    %c0_i32 = arith.constant 0 : i32
    %c0_i32_0 = arith.constant 0 : i32
    %c0_i32_1 = arith.constant 0 : i32
    return %c0_i32, %c0_i32_0 : i32, i32
  }
  func.func @transform_2(%arg0: i32) -> (i32, i32) {
    %c0_i32 = arith.constant 0 : i32
    %c0_i32_0 = arith.constant 0 : i32
    %c0_i32_1 = arith.constant 0 : i32
    return %c0_i32, %c0_i32_0 : i32, i32
  }
  func.func @transform_3(%arg0: i32) -> (i32, i32) {
    %c0_i32 = arith.constant 0 : i32
    %c0_i32_0 = arith.constant 0 : i32
    return %arg0, %c0_i32 : i32, i32
  }
}

</mosaic_0001>

<llo_original>
// kernel: tpu_custom_call.1
$region0: #{tpu_custom_call.1}
  #allocation0 [shape = 'u32[]', space=smem, size = 0x4, offset = 0x4, fixed_abs, tag = 'smem constant byte address 0x4 - core index']
  #allocation1 [shape = 'u32[144,128]{1,0:T(1,128)}', space=vmem, size = 0x12000, scoped, tag = 'internal scratch']
  %s0 = inlined_call_operand.hbm [shape: f32[16,768], index: 0, kind: input, shape index: {}]
  %s1 = inlined_call_operand.hbm [shape: bf16[768,128], index: 1, kind: input, shape index: {}]
  %s2 = inlined_call_operand.hbm [shape: bf16[128,768], index: 2, kind: input, shape index: {}]
  %s3 = inlined_call_operand.hbm [shape: f32[16,768], index: 3, kind: output, shape index: {}]
  %s4 = sld [smem:[#allocation0]]
  $region57: #{tpu_custom_call.1} parent=0
    _
  %s6 = ssub.s32 1, %s4
  %s7 = scalar_select 0, %s6, %s4
  $region1: #{tpu_custom_call.1} parent=0
    #allocation2 [shape = 'u8[49152]{0}', space=vmem, size = 0xc000, scoped, tag = 'input window, operand 0']
    #allocation3 [shape = 's32[2]{0}', space=sflag, size = 0x8, scoped, tag = 'scoped memory for tpu_custom_call.1']
    #allocation4 [shape = 's32[2]{0}', space=sflag, size = 0x8, scoped, tag = 'scoped memory for tpu_custom_call.1']
    #allocation5 [shape = 'u8[196608]{0}', space=vmem, size = 0x30000, scoped, tag = 'input window, operand 1, single buffered']
    #allocation6 [shape = 's32[1]{0}', space=sflag, size = 0x4, scoped, tag = 'scoped memory for tpu_custom_call.1']
    #allocation7 [shape = 'u8[196608]{0}', space=vmem, size = 0x30000, scoped, tag = 'input window, operand 2, single buffered']
    #allocation8 [shape = 'u8[49152]{0}', space=vmem, size = 0xc000, scoped, tag = 'output window, operand 0']
    %8 = vsyncpa [#allocation3], 0
    %s9 = scalar_lea.sflag [#allocation3], 1
    %10 = vsyncpa %s9, 0
    %11 = vsyncpa [#allocation6], 0
    %12 = vsyncpa [#allocation4], 0
    %s13 = scalar_lea.sflag [#allocation4], 1
    %14 = vsyncpa %s13, 0
    loop: start=0, step=1, limit=4
    $region2: #{tpu_custom_call.1} parent=1 // loop_pre_header
      _
    $region3: #{tpu_custom_call.1} parent=1 // loop_header
      %s16 = sphi 0, %s20
      %p17 = scmp.ge.s32.totalorder %s16, 4
      %s26 = sphi 0, %s28
      %s29 = sphi 0, %s26
      %s30 = sphi 0, %s29
      %s46 = sphi 0, %s30
      %s50 = sphi 0, %s50
      %s52 = sphi 0, %s50
      %s53 = sphi 0, %s52
      %s67 = sphi 0, %s53
      %s71 = sphi 0, %s71
      %s73 = sphi 0, %s71
      %s74 = sphi 0, %s73
      %s88 = sphi 0, %s74
      %s94 = sphi 0, %s96
      %s97 = sphi 0, %s94
      %s98 = sphi 0, %s97
      %s114 = sphi 0, %s98
    $region4: #{tpu_custom_call.1} parent=1 // loop_header_branch
      %19 = sbr.rel (%p17) target = $region8
    $region5: #{tpu_custom_call.1} parent=1 // loop_body
      %s21 = ssub.s32 %s16, 1
      %s22 = ssub.s32 %s16, 2
      %s23 = sadd.s32 %s16, 1
      %s24 = ssub.s32 %s16, %s23
      %p25 = scmp.eq.s32.totalorder %s24, 0
      %s27 = sadd.s32 %s26, 1
      %s28 = scalar_select %p25, %s26, %s27
      %p31 = pneg %p25
      %p32 = scmp.eq.s32.totalorder %s16, 1
      %p33 = por %p31, %p32
      %p34 = scmp.ne.s32.totalorder %s26, %s29
      %p35 = scmp.eq.s32.totalorder %s16, 0
      %p36 = por %p34, %p35
      %p37 = scmp.ne.s32.totalorder %s26, %s29
      %p38 = scmp.eq.s32.totalorder %s21, 1
      %p39 = por %p37, %p38
      %p40 = scmp.ne.s32.totalorder %s29, %s30
      %p41 = scmp.eq.s32.totalorder %s21, 0
      %p42 = por %p40, %p41
      %p43 = scmp.ne.s32.totalorder %s29, %s30
      %p44 = scmp.eq.s32.totalorder %s22, 1
      %p45 = por %p43, %p44
      %p47 = scmp.ne.s32.totalorder %s30, %s46
      %p48 = scmp.eq.s32.totalorder %s22, 0
      %p49 = por %p47, %p48
      %s51 = sadd.s32 %s50, 1
      %p54 = scmp.eq.s32.totalorder %s16, 1
      %p55 = scmp.ne.s32.totalorder %s50, %s52
      %p56 = scmp.eq.s32.totalorder %s16, 0
      %p57 = por %p55, %p56
      %p58 = scmp.ne.s32.totalorder %s50, %s52
      %p59 = scmp.eq.s32.totalorder %s21, 1
      %p60 = por %p58, %p59
      %p61 = scmp.ne.s32.totalorder %s52, %s53
      %p62 = scmp.eq.s32.totalorder %s21, 0
      %p63 = por %p61, %p62
      %p64 = scmp.ne.s32.totalorder %s52, %s53
      %p65 = scmp.eq.s32.totalorder %s22, 1
      %p66 = por %p64, %p65
      %p68 = scmp.ne.s32.totalorder %s53, %s67
      %p69 = scmp.eq.s32.totalorder %s22, 0
      %p70 = por %p68, %p69
      %s72 = sadd.s32 %s71, 1
      %p75 = scmp.eq.s32.totalorder %s16, 1
      %p76 = scmp.ne.s32.totalorder %s71, %s73
      %p77 = scmp.eq.s32.totalorder %s16, 0
      %p78 = por %p76, %p77
      %p79 = scmp.ne.s32.totalorder %s71, %s73
      %p80 = scmp.eq.s32.totalorder %s21, 1
      %p81 = por %p79, %p80
      %p82 = scmp.ne.s32.totalorder %s73, %s74
      %p83 = scmp.eq.s32.totalorder %s21, 0
      %p84 = por %p82, %p83
      %p85 = scmp.ne.s32.totalorder %s73, %s74
      %p86 = scmp.eq.s32.totalorder %s22, 1
      %p87 = por %p85, %p86
      %p89 = scmp.ne.s32.totalorder %s74, %s88
      %p90 = scmp.eq.s32.totalorder %s22, 0
      %p91 = por %p89, %p90
      %s92 = ssub.s32 %s16, %s23
      %p93 = scmp.eq.s32.totalorder %s92, 0
      %s95 = sadd.s32 %s94, 1
      %s96 = scalar_select %p93, %s94, %s95
      %p99 = pneg %p93
      %p100 = scmp.eq.s32.totalorder %s16, 1
      %p101 = por %p99, %p100
      %p102 = scmp.ne.s32.totalorder %s94, %s97
      %p103 = scmp.eq.s32.totalorder %s16, 0
      %p104 = por %p102, %p103
      %p105 = scmp.ne.s32.totalorder %s94, %s97
      %p106 = scmp.eq.s32.totalorder %s21, 1
      %p107 = por %p105, %p106
      %p108 = scmp.ne.s32.totalorder %s97, %s98
      %p109 = scmp.eq.s32.totalorder %s21, 0
      %p110 = por %p108, %p109
      %p111 = scmp.ne.s32.totalorder %s97, %s98
      %p112 = scmp.eq.s32.totalorder %s22, 1
      %p113 = por %p111, %p112
      %p115 = scmp.ne.s32.totalorder %s98, %s114
      %p116 = scmp.eq.s32.totalorder %s22, 0
      %p117 = por %p115, %p116
      %p118 = scmp.le.s32.totalorder 1, %s16
      %p119 = scmp.lt.s32.totalorder %s16, 3
      %p120 = pnand %p118, %p119
      %p121 = pneg %p120
      // Predicated region
      $region9: #{tpu_custom_call.1} parent=5 // pred_check
        _
      $region10: #{tpu_custom_call.1} parent=5 // pred_check_branch
        %123 = sbr.rel (%p120) target = $region12
      $region11: #{tpu_custom_call.1} parent=5 // pred_region
        %s124 = ssub.s32 %s16, 1
        // Predicated region
        $region13: #{tpu_custom_call.1} parent=11 // pred_check
          %p125 = pneg %p63
        $region14: #{tpu_custom_call.1} parent=11 // pred_check_branch
          %127 = sbr.rel (%p125) target = $region16
        $region15: #{tpu_custom_call.1} parent=11 // pred_region
          %s129 = ssub.s32 6144, 6144
          %130 = vsyncadd [#allocation6], %s129
          %s131 = sshll.u32 [#allocation5], 4
          %s132 = int_to_ptr.vmem [resolvable:$true] %s131
          %137 = dma.hbm_to_vmem [thread:$0]  %s1, 6144, %s132, [#allocation6], 64, 64, 4
        $region16: #{tpu_custom_call.1} parent=11 // pred_fallthru
          _
        // Predicated region
        $region17: #{tpu_custom_call.1} parent=11 // pred_check
          %p138 = pneg %p84
        $region18: #{tpu_custom_call.1} parent=11 // pred_check_branch
          %140 = sbr.rel (%p138) target = $region20
        $region19: #{tpu_custom_call.1} parent=11 // pred_region
          %s142 = ssub.s32 6144, 6144
          %143 = vsyncadd [#allocation6], %s142
          %s144 = sshll.u32 [#allocation7], 4
          %s145 = int_to_ptr.vmem [resolvable:$true] %s144
          %150 = dma.hbm_to_vmem [thread:$0]  %s2, 6144, %s145, [#allocation6], 384, 384, 24
        $region20: #{tpu_custom_call.1} parent=11 // pred_fallthru
          _
      $region12: #{tpu_custom_call.1} parent=5 // pred_fallthru
        _
      %p151 = scmp.lt.s32.totalorder %s16, 2
      // Predicated region
      $region21: #{tpu_custom_call.1} parent=5 // pred_check
        %p152 = pneg %p151
      $region22: #{tpu_custom_call.1} parent=5 // pred_check_branch
        %154 = sbr.rel (%p152) target = $region24
      $region23: #{tpu_custom_call.1} parent=5 // pred_region
        // Predicated region
        $region25: #{tpu_custom_call.1} parent=23 // pred_check
          %p155 = pneg %p36
        $region26: #{tpu_custom_call.1} parent=23 // pred_check_branch
          %157 = sbr.rel (%p155) target = $region28
        $region27: #{tpu_custom_call.1} parent=23 // pred_region
          %s158 = sand.u32 %s26, 1
          %s159 = scalar_lea.sflag [#allocation3], %s158
          %s160 = sand.u32 %s26, 1
          %s161 = smul.addr %s160, 48
          %s162 = scalar_lea.vmem [#allocation2], %s161
          %s164 = ssub.s32 768, 768
          %165 = vsyncadd %s159, %s164
          %s166 = smul.addr %s16, 6
          %s167 = smul.addr %s166, 128
          %s168 = scalar_lea.hbm %s0, %s167
          %s170 = sshll.u32 %s162, 4
          %s171 = int_to_ptr.vmem [resolvable:$true] %s170
          %173 = dma.hbm_to_vmem [thread:$0]  %s168, 768, %s171, %s159
        $region28: #{tpu_custom_call.1} parent=23 // pred_fallthru
          _
      $region24: #{tpu_custom_call.1} parent=5 // pred_fallthru
        _
      %p174 = scmp.le.s32.totalorder 1, %s16
      %p175 = scmp.lt.s32.totalorder %s16, 3
      %p176 = pnand %p174, %p175
      %p177 = pneg %p176
      // Predicated region
      $region29: #{tpu_custom_call.1} parent=5 // pred_check
        _
      $region30: #{tpu_custom_call.1} parent=5 // pred_check_branch
        %179 = sbr.rel (%p176) target = $region32
      $region31: #{tpu_custom_call.1} parent=5 // pred_region
        %s180 = ssub.s32 %s16, 1
        %s181 = sand.u32 %s29, 1
        %s182 = scalar_lea.sflag [#allocation3], %s181
        %s183 = sand.u32 %s29, 1
        %s184 = smul.addr %s183, 48
        %s185 = scalar_lea.vmem [#allocation2], %s184
        // Predicated region
        $region33: #{tpu_custom_call.1} parent=31 // pred_check
          %p186 = pneg %p42
        $region34: #{tpu_custom_call.1} parent=31 // pred_check_branch
          %188 = sbr.rel (%p186) target = $region36
        $region35: #{tpu_custom_call.1} parent=31 // pred_region
          %189 = dma.done %s182, 768
        $region36: #{tpu_custom_call.1} parent=31 // pred_fallthru
          _
        // Predicated region
        $region37: #{tpu_custom_call.1} parent=31 // pred_check
          %p190 = pneg %p63
        $region38: #{tpu_custom_call.1} parent=31 // pred_check_branch
          %192 = sbr.rel (%p190) target = $region40
        $region39: #{tpu_custom_call.1} parent=31 // pred_region
          %193 = dma.done [#allocation6], 6144
        $region40: #{tpu_custom_call.1} parent=31 // pred_fallthru
          _
        // Predicated region
        $region41: #{tpu_custom_call.1} parent=31 // pred_check
          %p194 = pneg %p84
        $region42: #{tpu_custom_call.1} parent=31 // pred_check_branch
          %196 = sbr.rel (%p194) target = $region44
        $region43: #{tpu_custom_call.1} parent=31 // pred_region
          %197 = dma.done [#allocation6], 6144
        $region44: #{tpu_custom_call.1} parent=31 // pred_fallthru
          _
        %s198 = sand.u32 %s29, 1
        %s199 = scalar_lea.sflag [#allocation3], %s198
        %s200 = sand.u32 %s29, 1
        %s201 = smul.addr %s200, 48
        %s202 = scalar_lea.vmem [#allocation2], %s201
        %p203 = pneg %p42
        %p204 = pneg %p39
        %p205 = pneg %p63
        %p206 = pneg %p60
        %p207 = pneg %p84
        %p208 = pneg %p81
        %p209 = pneg %p110
        %p210 = pneg %p107
        %s211 = sand.u32 %s97, 1
        %s212 = scalar_lea.sflag [#allocation4], %s211
        %s213 = sand.u32 %s97, 1
        %s214 = smul.addr %s213, 48
        %s215 = scalar_lea.vmem [#allocation8], %s214
        %v217 = vld [vmem:[%s185] sm:$0xff]
        %v218 = vld [vmem:[%s185 + $0x8] sm:$0xff]
        %v219 = vld [vmem:[%s185 + $0x10] sm:$0xff]
        %v220 = vld [vmem:[%s185 + $0x18] sm:$0xff]
        %v221 = vld [vmem:[%s185 + $0x20] sm:$0xff]
        %v222 = vld [vmem:[%s185 + $0x28] sm:$0xff]
        %v223 = vpack.c.bf16 %v217, %v217
        %v224 = vpack.c.bf16 %v218, %v218
        %v225 = vpack.c.bf16 %v219, %v219
        %v226 = vpack.c.bf16 %v220, %v220
        %v227 = vpack.c.bf16 %v221, %v221
        %v228 = vpack.c.bf16 %v222, %v222
        %v229 = vld [vmem:[#allocation5] sm:$0xf]
        %v230 = vld [vmem:[#allocation5 + $0x4] sm:$0xf]
        %v231 = vld [vmem:[#allocation5 + $0x8] sm:$0xf]
        %v232 = vld [vmem:[#allocation5 + $0xc] sm:$0xf]
        %v233 = vld [vmem:[#allocation5 + $0x10] sm:$0xf]
        %v234 = vld [vmem:[#allocation5 + $0x14] sm:$0xf]
        %v235 = vld [vmem:[#allocation5 + $0x18] sm:$0xf]
        %v236 = vld [vmem:[#allocation5 + $0x1c] sm:$0xf]
        %v237 = vld [vmem:[#allocation5 + $0x20] sm:$0xf]
        %v238 = vld [vmem:[#allocation5 + $0x24] sm:$0xf]
        %v239 = vld [vmem:[#allocation5 + $0x28] sm:$0xf]
        %v240 = vld [vmem:[#allocation5 + $0x2c] sm:$0xf]
        %v241 = vld [vmem:[#allocation5 + $0x30] sm:$0xf]
        %v242 = vld [vmem:[#allocation5 + $0x34] sm:$0xf]
        %v243 = vld [vmem:[#allocation5 + $0x38] sm:$0xf]
        %v244 = vld [vmem:[#allocation5 + $0x3c] sm:$0xf]
        %v245 = vld [vmem:[#allocation5 + $0x40] sm:$0xf]
        %v246 = vld [vmem:[#allocation5 + $0x44] sm:$0xf]
        %v247 = vld [vmem:[#allocation5 + $0x48] sm:$0xf]
        %v248 = vld [vmem:[#allocation5 + $0x4c] sm:$0xf]
        %v249 = vld [vmem:[#allocation5 + $0x50] sm:$0xf]
        %v250 = vld [vmem:[#allocation5 + $0x54] sm:$0xf]
        %v251 = vld [vmem:[#allocation5 + $0x58] sm:$0xf]
        %v252 = vld [vmem:[#allocation5 + $0x5c] sm:$0xf]
        %v253 = vld [vmem:[#allocation5 + $0x60] sm:$0xf]
        %v254 = vld [vmem:[#allocation5 + $0x64] sm:$0xf]
        %v255 = vld [vmem:[#allocation5 + $0x68] sm:$0xf]
        %v256 = vld [vmem:[#allocation5 + $0x6c] sm:$0xf]
        %v257 = vld [vmem:[#allocation5 + $0x70] sm:$0xf]
        %v258 = vld [vmem:[#allocation5 + $0x74] sm:$0xf]
        %v259 = vld [vmem:[#allocation5 + $0x78] sm:$0xf]
        %v260 = vld [vmem:[#allocation5 + $0x7c] sm:$0xf]
        %v261 = vld [vmem:[#allocation5 + $0x80] sm:$0xf]
        %v262 = vld [vmem:[#allocation5 + $0x84] sm:$0xf]
        %v263 = vld [vmem:[#allocation5 + $0x88] sm:$0xf]
        %v264 = vld [vmem:[#allocation5 + $0x8c] sm:$0xf]
        %v265 = vld [vmem:[#allocation5 + $0x90] sm:$0xf]
        %v266 = vld [vmem:[#allocation5 + $0x94] sm:$0xf]
        %v267 = vld [vmem:[#allocation5 + $0x98] sm:$0xf]
        %v268 = vld [vmem:[#allocation5 + $0x9c] sm:$0xf]
        %v269 = vld [vmem:[#allocation5 + $0xa0] sm:$0xf]
        %v270 = vld [vmem:[#allocation5 + $0xa4] sm:$0xf]
        %v271 = vld [vmem:[#allocation5 + $0xa8] sm:$0xf]
        %v272 = vld [vmem:[#allocation5 + $0xac] sm:$0xf]
        %v273 = vld [vmem:[#allocation5 + $0xb0] sm:$0xf]
        %v274 = vld [vmem:[#allocation5 + $0xb4] sm:$0xf]
        %v275 = vld [vmem:[#allocation5 + $0xb8] sm:$0xf]
        %v276 = vld [vmem:[#allocation5 + $0xbc] sm:$0xf]
        %v277 = vld [vmem:[#allocation5 + $0xc0] sm:$0xf]
        %v278 = vld [vmem:[#allocation5 + $0xc4] sm:$0xf]
        %v279 = vld [vmem:[#allocation5 + $0xc8] sm:$0xf]
        %v280 = vld [vmem:[#allocation5 + $0xcc] sm:$0xf]
        %v281 = vld [vmem:[#allocation5 + $0xd0] sm:$0xf]
        %v282 = vld [vmem:[#allocation5 + $0xd4] sm:$0xf]
        %v283 = vld [vmem:[#allocation5 + $0xd8] sm:$0xf]
        %v284 = vld [vmem:[#allocation5 + $0xdc] sm:$0xf]
        %v285 = vld [vmem:[#allocation5 + $0xe0] sm:$0xf]
        %v286 = vld [vmem:[#allocation5 + $0xe4] sm:$0xf]
        %v287 = vld [vmem:[#allocation5 + $0xe8] sm:$0xf]
        %v288 = vld [vmem:[#allocation5 + $0xec] sm:$0xf]
        %v289 = vld [vmem:[#allocation5 + $0xf0] sm:$0xf]
        %v290 = vld [vmem:[#allocation5 + $0xf4] sm:$0xf]
        %v291 = vld [vmem:[#allocation5 + $0xf8] sm:$0xf]
        %v292 = vld [vmem:[#allocation5 + $0xfc] sm:$0xf]
        %v293 = vld [vmem:[#allocation5 + $0x100] sm:$0xf]
        %v294 = vld [vmem:[#allocation5 + $0x104] sm:$0xf]
        %v295 = vld [vmem:[#allocation5 + $0x108] sm:$0xf]
        %v296 = vld [vmem:[#allocation5 + $0x10c] sm:$0xf]
        %v297 = vld [vmem:[#allocation5 + $0x110] sm:$0xf]
        %v298 = vld [vmem:[#allocation5 + $0x114] sm:$0xf]
        %v299 = vld [vmem:[#allocation5 + $0x118] sm:$0xf]
        %v300 = vld [vmem:[#allocation5 + $0x11c] sm:$0xf]
        %v301 = vld [vmem:[#allocation5 + $0x120] sm:$0xf]
        %v302 = vld [vmem:[#allocation5 + $0x124] sm:$0xf]
        %v303 = vld [vmem:[#allocation5 + $0x128] sm:$0xf]
        %v304 = vld [vmem:[#allocation5 + $0x12c] sm:$0xf]
        %v305 = vld [vmem:[#allocation5 + $0x130] sm:$0xf]
        %v306 = vld [vmem:[#allocation5 + $0x134] sm:$0xf]
        %v307 = vld [vmem:[#allocation5 + $0x138] sm:$0xf]
        %v308 = vld [vmem:[#allocation5 + $0x13c] sm:$0xf]
        %v309 = vld [vmem:[#allocation5 + $0x140] sm:$0xf]
        %v310 = vld [vmem:[#allocation5 + $0x144] sm:$0xf]
        %v311 = vld [vmem:[#allocation5 + $0x148] sm:$0xf]
        %v312 = vld [vmem:[#allocation5 + $0x14c] sm:$0xf]
        %v313 = vld [vmem:[#allocation5 + $0x150] sm:$0xf]
        %v314 = vld [vmem:[#allocation5 + $0x154] sm:$0xf]
        %v315 = vld [vmem:[#allocation5 + $0x158] sm:$0xf]
        %v316 = vld [vmem:[#allocation5 + $0x15c] sm:$0xf]
        %v317 = vld [vmem:[#allocation5 + $0x160] sm:$0xf]
        %v318 = vld [vmem:[#allocation5 + $0x164] sm:$0xf]
        %v319 = vld [vmem:[#allocation5 + $0x168] sm:$0xf]
        %v320 = vld [vmem:[#allocation5 + $0x16c] sm:$0xf]
        %v321 = vld [vmem:[#allocation5 + $0x170] sm:$0xf]
        %v322 = vld [vmem:[#allocation5 + $0x174] sm:$0xf]
        %v323 = vld [vmem:[#allocation5 + $0x178] sm:$0xf]
        %v324 = vld [vmem:[#allocation5 + $0x17c] sm:$0xf]
        %v421 = vunpack.c.l.b16 %v229
        %v422 = vunpack.c.l.b16 %v230
        %v423 = vunpack.c.l.b16 %v231
        %v424 = vunpack.c.l.b16 %v232
        %v425 = vunpack.c.l.b16 %v233
        %v426 = vunpack.c.l.b16 %v234
        %v427 = vunpack.c.l.b16 %v235
        %v428 = vunpack.c.l.b16 %v236
        %v429 = vunpack.c.l.b16 %v237
        %v430 = vunpack.c.l.b16 %v238
        %v431 = vunpack.c.l.b16 %v239
        %v432 = vunpack.c.l.b16 %v240
        %v433 = vunpack.c.l.b16 %v241
        %v434 = vunpack.c.l.b16 %v242
        %v435 = vunpack.c.l.b16 %v243
        %v436 = vunpack.c.l.b16 %v244
        %v437 = vunpack.c.l.b16 %v245
        %v438 = vunpack.c.l.b16 %v246
        %v439 = vunpack.c.l.b16 %v247
        %v440 = vunpack.c.l.b16 %v248
        %v441 = vunpack.c.l.b16 %v249
        %v442 = vunpack.c.l.b16 %v250
        %v443 = vunpack.c.l.b16 %v251
        %v444 = vunpack.c.l.b16 %v252
        %v445 = vunpack.c.l.b16 %v253
        %v446 = vunpack.c.l.b16 %v254
        %v447 = vunpack.c.l.b16 %v255
        %v448 = vunpack.c.l.b16 %v256
        %v449 = vunpack.c.l.b16 %v257
        %v450 = vunpack.c.l.b16 %v258
        %v451 = vunpack.c.l.b16 %v259
        %v452 = vunpack.c.l.b16 %v260
        %v453 = vunpack.c.l.b16 %v261
        %v454 = vunpack.c.l.b16 %v262
        %v455 = vunpack.c.l.b16 %v263
        %v456 = vunpack.c.l.b16 %v264
        %v457 = vunpack.c.l.b16 %v265
        %v458 = vunpack.c.l.b16 %v266
        %v459 = vunpack.c.l.b16 %v267
        %v460 = vunpack.c.l.b16 %v268
        %v461 = vunpack.c.l.b16 %v269
        %v462 = vunpack.c.l.b16 %v270
        %v463 = vunpack.c.l.b16 %v271
        %v464 = vunpack.c.l.b16 %v272
        %v465 = vunpack.c.l.b16 %v273
        %v466 = vunpack.c.l.b16 %v274
        %v467 = vunpack.c.l.b16 %v275
        %v468 = vunpack.c.l.b16 %v276
        %v469 = vunpack.c.l.b16 %v277
        %v470 = vunpack.c.l.b16 %v278
        %v471 = vunpack.c.l.b16 %v279
        %v472 = vunpack.c.l.b16 %v280
        %v473 = vunpack.c.l.b16 %v281
        %v474 = vunpack.c.l.b16 %v282
        %v475 = vunpack.c.l.b16 %v283
        %v476 = vunpack.c.l.b16 %v284
        %v477 = vunpack.c.l.b16 %v285
        %v478 = vunpack.c.l.b16 %v286
        %v479 = vunpack.c.l.b16 %v287
        %v480 = vunpack.c.l.b16 %v288
        %v481 = vunpack.c.l.b16 %v289
        %v482 = vunpack.c.l.b16 %v290
        %v483 = vunpack.c.l.b16 %v291
        %v484 = vunpack.c.l.b16 %v292
        %v485 = vunpack.c.l.b16 %v293
        %v486 = vunpack.c.l.b16 %v294
        %v487 = vunpack.c.l.b16 %v295
        %v488 = vunpack.c.l.b16 %v296
        %v489 = vunpack.c.l.b16 %v297
        %v490 = vunpack.c.l.b16 %v298
        %v491 = vunpack.c.l.b16 %v299
        %v492 = vunpack.c.l.b16 %v300
        %v493 = vunpack.c.l.b16 %v301
        %v494 = vunpack.c.l.b16 %v302
        %v495 = vunpack.c.l.b16 %v303
        %v496 = vunpack.c.l.b16 %v304
        %v497 = vunpack.c.l.b16 %v305
        %v498 = vunpack.c.l.b16 %v306
        %v499 = vunpack.c.l.b16 %v307
        %v500 = vunpack.c.l.b16 %v308
        %v501 = vunpack.c.l.b16 %v309
        %v502 = vunpack.c.l.b16 %v310
        %v503 = vunpack.c.l.b16 %v311
        %v504 = vunpack.c.l.b16 %v312
        %v505 = vunpack.c.l.b16 %v313
        %v506 = vunpack.c.l.b16 %v314
        %v507 = vunpack.c.l.b16 %v315
        %v508 = vunpack.c.l.b16 %v316
        %v509 = vunpack.c.l.b16 %v317
        %v510 = vunpack.c.l.b16 %v318
        %v511 = vunpack.c.l.b16 %v319
        %v512 = vunpack.c.l.b16 %v320
        %v513 = vunpack.c.l.b16 %v321
        %v514 = vunpack.c.l.b16 %v322
        %v515 = vunpack.c.l.b16 %v323
        %v516 = vunpack.c.l.b16 %v324
        %v517 = vpack.c.b16 %v422, %v421
        %v518 = vpack.c.b16 %v424, %v423
        %v519 = vpack.c.b16 %v426, %v425
        %v520 = vpack.c.b16 %v428, %v427
        %v521 = vpack.c.b16 %v430, %v429
        %v522 = vpack.c.b16 %v432, %v431
        %v523 = vpack.c.b16 %v434, %v433
        %v524 = vpack.c.b16 %v436, %v435
        %v525 = vpack.c.b16 %v438, %v437
        %v526 = vpack.c.b16 %v440, %v439
        %v527 = vpack.c.b16 %v442, %v441
        %v528 = vpack.c.b16 %v444, %v443
        %v529 = vpack.c.b16 %v446, %v445
        %v530 = vpack.c.b16 %v448, %v447
        %v531 = vpack.c.b16 %v450, %v449
        %v532 = vpack.c.b16 %v452, %v451
        %v533 = vpack.c.b16 %v454, %v453
        %v534 = vpack.c.b16 %v456, %v455
        %v535 = vpack.c.b16 %v458, %v457
        %v536 = vpack.c.b16 %v460, %v459
        %v537 = vpack.c.b16 %v462, %v461
        %v538 = vpack.c.b16 %v464, %v463
        %v539 = vpack.c.b16 %v466, %v465
        %v540 = vpack.c.b16 %v468, %v467
        %v541 = vpack.c.b16 %v470, %v469
        %v542 = vpack.c.b16 %v472, %v471
        %v543 = vpack.c.b16 %v474, %v473
        %v544 = vpack.c.b16 %v476, %v475
        %v545 = vpack.c.b16 %v478, %v477
        %v546 = vpack.c.b16 %v480, %v479
        %v547 = vpack.c.b16 %v482, %v481
        %v548 = vpack.c.b16 %v484, %v483
        %v549 = vpack.c.b16 %v486, %v485
        %v550 = vpack.c.b16 %v488, %v487
        %v551 = vpack.c.b16 %v490, %v489
        %v552 = vpack.c.b16 %v492, %v491
        %v553 = vpack.c.b16 %v494, %v493
        %v554 = vpack.c.b16 %v496, %v495
        %v555 = vpack.c.b16 %v498, %v497
        %v556 = vpack.c.b16 %v500, %v499
        %v557 = vpack.c.b16 %v502, %v501
        %v558 = vpack.c.b16 %v504, %v503
        %v559 = vpack.c.b16 %v506, %v505
        %v560 = vpack.c.b16 %v508, %v507
        %v561 = vpack.c.b16 %v510, %v509
        %v562 = vpack.c.b16 %v512, %v511
        %v563 = vpack.c.b16 %v514, %v513
        %v564 = vpack.c.b16 %v516, %v515
        %613 = vmatprep.subr.bf16.mxu0 0
        %614 = vmatpush1.bf16.msra.mxu0 %v517
        %615 = vmatprep.subr.bf16.mxu0 0
        %616 = vmatpush1.bf16.msra.mxu0 %v518
        %617 = vmatprep.subr.bf16.mxu0 0
        %618 = vmatpush1.bf16.msra.mxu0 %v519
        %619 = vmatprep.subr.bf16.mxu0 0
        %620 = vmatpush1.bf16.msra.mxu0 %v520
        %621 = vmatprep.subr.bf16.mxu0 0
        %622 = vmatpush1.bf16.msra.mxu0 %v521
        %623 = vmatprep.subr.bf16.mxu0 0
        %624 = vmatpush1.bf16.msra.mxu0 %v522
        %625 = vmatprep.subr.bf16.mxu0 0
        %626 = vmatpush1.bf16.msra.mxu0 %v523
        %627 = vmatprep.subr.bf16.mxu0 0
        %628 = vmatpush1.bf16.msra.mxu0 %v524
        %629 = vmatprep.subr.bf16.mxu0 0
        %630 = vmatpush1.bf16.msra.mxu0 %v525
        %631 = vmatprep.subr.bf16.mxu0 0
        %632 = vmatpush1.bf16.msra.mxu0 %v526
        %633 = vmatprep.subr.bf16.mxu0 0
        %634 = vmatpush1.bf16.msra.mxu0 %v527
        %635 = vmatprep.subr.bf16.mxu0 0
        %636 = vmatpush1.bf16.msra.mxu0 %v528
        %637 = vmatprep.subr.bf16.mxu0 0
        %638 = vmatpush1.bf16.msra.mxu0 %v529
        %639 = vmatprep.subr.bf16.mxu0 0
        %640 = vmatpush1.bf16.msra.mxu0 %v530
        %641 = vmatprep.subr.bf16.mxu0 0
        %642 = vmatpush1.bf16.msra.mxu0 %v531
        %643 = vmatprep.subr.bf16.mxu0 0
        %644 = vmatpush1.bf16.msra.mxu0 %v532
        %645 = vmatprep.mubr.bf16.mxu0 %v224
        %646 = vmatmul.mubr.bf16.gmra.mrb[0].mxu0 %v223
        %v647 = vpop.f32.mrb[0].mxu0
        %v648 = vadd.f32 0.0, %v647
        %v649 = vpop.f32.mrb[0].mxu0
        %v650 = vpop.f32.mrb[0].mxu0
        %v651 = vpop.f32.mrb[0].mxu0
        %652 = vdwg.mxu0
        %653 = vmatprep.subr.bf16.mxu0 0
        %654 = vmatpush1.bf16.msra.mxu0 %v533
        %655 = vmatprep.subr.bf16.mxu0 0
        %656 = vmatpush1.bf16.msra.mxu0 %v534
        %657 = vmatprep.subr.bf16.mxu0 0
        %658 = vmatpush1.bf16.msra.mxu0 %v535
        %659 = vmatprep.subr.bf16.mxu0 0
        %660 = vmatpush1.bf16.msra.mxu0 %v536
        %661 = vmatprep.subr.bf16.mxu0 0
        %662 = vmatpush1.bf16.msra.mxu0 %v537
        %663 = vmatprep.subr.bf16.mxu0 0
        %664 = vmatpush1.bf16.msra.mxu0 %v538
        %665 = vmatprep.subr.bf16.mxu0 0
        %666 = vmatpush1.bf16.msra.mxu0 %v539
        %667 = vmatprep.subr.bf16.mxu0 0
        %668 = vmatpush1.bf16.msra.mxu0 %v540
        %669 = vmatprep.subr.bf16.mxu0 0
        %670 = vmatpush1.bf16.msra.mxu0 %v541
        %671 = vmatprep.subr.bf16.mxu0 0
        %672 = vmatpush1.bf16.msra.mxu0 %v542
        %673 = vmatprep.subr.bf16.mxu0 0
        %674 = vmatpush1.bf16.msra.mxu0 %v543
        %675 = vmatprep.subr.bf16.mxu0 0
        %676 = vmatpush1.bf16.msra.mxu0 %v544
        %677 = vmatprep.subr.bf16.mxu0 0
        %678 = vmatpush1.bf16.msra.mxu0 %v545
        %679 = vmatprep.subr.bf16.mxu0 0
        %680 = vmatpush1.bf16.msra.mxu0 %v546
        %681 = vmatprep.subr.bf16.mxu0 0
        %682 = vmatpush1.bf16.msra.mxu0 %v547
        %683 = vmatprep.subr.bf16.mxu0 0
        %684 = vmatpush1.bf16.msra.mxu0 %v548
        %685 = vmatprep.mubr.bf16.mxu0 %v226
        %686 = vmatmul.mubr.bf16.gmra.mrb[0].mxu0 %v225
        %v687 = vpop.f32.mrb[0].mxu0
        %v688 = vadd.f32 %v648, %v687
        %v689 = vpop.f32.mrb[0].mxu0
        %v690 = vpop.f32.mrb[0].mxu0
        %v691 = vpop.f32.mrb[0].mxu0
        %692 = vdwg.mxu0
        %693 = vmatprep.subr.bf16.mxu0 0
        %694 = vmatpush1.bf16.msra.mxu0 %v549
        %695 = vmatprep.subr.bf16.mxu0 0
        %696 = vmatpush1.bf16.msra.mxu0 %v550
        %697 = vmatprep.subr.bf16.mxu0 0
        %698 = vmatpush1.bf16.msra.mxu0 %v551
        %699 = vmatprep.subr.bf16.mxu0 0
        %700 = vmatpush1.bf16.msra.mxu0 %v552
        %701 = vmatprep.subr.bf16.mxu0 0
        %702 = vmatpush1.bf16.msra.mxu0 %v553
        %703 = vmatprep.subr.bf16.mxu0 0
        %704 = vmatpush1.bf16.msra.mxu0 %v554
        %705 = vmatprep.subr.bf16.mxu0 0
        %706 = vmatpush1.bf16.msra.mxu0 %v555
        %707 = vmatprep.subr.bf16.mxu0 0
        %708 = vmatpush1.bf16.msra.mxu0 %v556
        %709 = vmatprep.subr.bf16.mxu0 0
        %710 = vmatpush1.bf16.msra.mxu0 %v557
        %711 = vmatprep.subr.bf16.mxu0 0
        %712 = vmatpush1.bf16.msra.mxu0 %v558
        %713 = vmatprep.subr.bf16.mxu0 0
        %714 = vmatpush1.bf16.msra.mxu0 %v559
        %715 = vmatprep.subr.bf16.mxu0 0
        %716 = vmatpush1.bf16.msra.mxu0 %v560
        %717 = vmatprep.subr.bf16.mxu0 0
        %718 = vmatpush1.bf16.msra.mxu0 %v561
        %719 = vmatprep.subr.bf16.mxu0 0
        %720 = vmatpush1.bf16.msra.mxu0 %v562
        %721 = vmatprep.subr.bf16.mxu0 0
        %722 = vmatpush1.bf16.msra.mxu0 %v563
        %723 = vmatprep.subr.bf16.mxu0 0
        %724 = vmatpush1.bf16.msra.mxu0 %v564
        %725 = vmatprep.mubr.bf16.mxu0 %v228
        %726 = vmatmul.mubr.bf16.gmra.mrb[0].mxu0 %v227
        %v727 = vpop.f32.mrb[0].mxu0
        %v728 = vadd.f32 %v688, %v727
        %v729 = vpop.f32.mrb[0].mxu0
        %v730 = vpop.f32.mrb[0].mxu0
        %v731 = vpop.f32.mrb[0].mxu0
        %732 = vdwg.mxu0
        %v733 = vmax.f32 %v728, 0.0
        %v734 = vpack.c.bf16 %v733, %v733
        %v735 = vld [vmem:[#allocation7] sm:$0xff]
        %v736 = vld [vmem:[#allocation7 + $0x8] sm:$0xff]
        %v737 = vld [vmem:[#allocation7 + $0x10] sm:$0xff]
        %v738 = vld [vmem:[#allocation7 + $0x18] sm:$0xff]
        %v739 = vld [vmem:[#allocation7 + $0x20] sm:$0xff]
        %v740 = vld [vmem:[#allocation7 + $0x28] sm:$0xff]
        %v741 = vld [vmem:[#allocation7 + $0x30] sm:$0xff]
        %v742 = vld [vmem:[#allocation7 + $0x38] sm:$0xff]
        %v743 = vld [vmem:[#allocation7 + $0x40] sm:$0xff]
        %v744 = vld [vmem:[#allocation7 + $0x48] sm:$0xff]
        %v745 = vld [vmem:[#allocation7 + $0x50] sm:$0xff]
        %v746 = vld [vmem:[#allocation7 + $0x58] sm:$0xff]
        %v747 = vld [vmem:[#allocation7 + $0x60] sm:$0xff]
        %v748 = vld [vmem:[#allocation7 + $0x68] sm:$0xff]
        %v749 = vld [vmem:[#allocation7 + $0x70] sm:$0xff]
        %v750 = vld [vmem:[#allocation7 + $0x78] sm:$0xff]
        %v751 = vld [vmem:[#allocation7 + $0x80] sm:$0xff]
        %v752 = vld [vmem:[#allocation7 + $0x88] sm:$0xff]
        %v753 = vld [vmem:[#allocation7 + $0x90] sm:$0xff]
        %v754 = vld [vmem:[#allocation7 + $0x98] sm:$0xff]
        %v755 = vld [vmem:[#allocation7 + $0xa0] sm:$0xff]
        %v756 = vld [vmem:[#allocation7 + $0xa8] sm:$0xff]
        %v757 = vld [vmem:[#allocation7 + $0xb0] sm:$0xff]
        %v758 = vld [vmem:[#allocation7 + $0xb8] sm:$0xff]
        %v759 = vld [vmem:[#allocation7 + $0xc0] sm:$0xff]
        %v760 = vld [vmem:[#allocation7 + $0xc8] sm:$0xff]
        %v761 = vld [vmem:[#allocation7 + $0xd0] sm:$0xff]
        %v762 = vld [vmem:[#allocation7 + $0xd8] sm:$0xff]
        %v763 = vld [vmem:[#allocation7 + $0xe0] sm:$0xff]
        %v764 = vld [vmem:[#allocation7 + $0xe8] sm:$0xff]
        %v765 = vld [vmem:[#allocation7 + $0xf0] sm:$0xff]
        %v766 = vld [vmem:[#allocation7 + $0xf8] sm:$0xff]
        %v767 = vld [vmem:[#allocation7 + $0x100] sm:$0xff]
        %v768 = vld [vmem:[#allocation7 + $0x108] sm:$0xff]
        %v769 = vld [vmem:[#allocation7 + $0x110] sm:$0xff]
        %v770 = vld [vmem:[#allocation7 + $0x118] sm:$0xff]
        %v771 = vld [vmem:[#allocation7 + $0x120] sm:$0xff]
        %v772 = vld [vmem:[#allocation7 + $0x128] sm:$0xff]
        %v773 = vld [vmem:[#allocation7 + $0x130] sm:$0xff]
        %v774 = vld [vmem:[#allocation7 + $0x138] sm:$0xff]
        %v775 = vld [vmem:[#allocation7 + $0x140] sm:$0xff]
        %v776 = vld [vmem:[#allocation7 + $0x148] sm:$0xff]
        %v777 = vld [vmem:[#allocation7 + $0x150] sm:$0xff]
        %v778 = vld [vmem:[#allocation7 + $0x158] sm:$0xff]
        %v779 = vld [vmem:[#allocation7 + $0x160] sm:$0xff]
        %v780 = vld [vmem:[#allocation7 + $0x168] sm:$0xff]
        %v781 = vld [vmem:[#allocation7 + $0x170] sm:$0xff]
        %v782 = vld [vmem:[#allocation7 + $0x178] sm:$0xff]
        %v831 = vunpack.c.l.b16 %v735
        %v832 = vunpack.c.h.b16 %v735
        %v833 = vunpack.c.l.b16 %v736
        %v834 = vunpack.c.h.b16 %v736
        %v835 = vunpack.c.l.b16 %v737
        %v836 = vunpack.c.h.b16 %v737
        %v837 = vunpack.c.l.b16 %v738
        %v838 = vunpack.c.h.b16 %v738
        %v839 = vunpack.c.l.b16 %v739
        %v840 = vunpack.c.h.b16 %v739
        %v841 = vunpack.c.l.b16 %v740
        %v842 = vunpack.c.h.b16 %v740
        %v843 = vunpack.c.l.b16 %v741
        %v844 = vunpack.c.h.b16 %v741
        %v845 = vunpack.c.l.b16 %v742
        %v846 = vunpack.c.h.b16 %v742
        %v847 = vunpack.c.l.b16 %v743
        %v848 = vunpack.c.h.b16 %v743
        %v849 = vunpack.c.l.b16 %v744
        %v850 = vunpack.c.h.b16 %v744
        %v851 = vunpack.c.l.b16 %v745
        %v852 = vunpack.c.h.b16 %v745
        %v853 = vunpack.c.l.b16 %v746
        %v854 = vunpack.c.h.b16 %v746
        %v855 = vunpack.c.l.b16 %v747
        %v856 = vunpack.c.h.b16 %v747
        %v857 = vunpack.c.l.b16 %v748
        %v858 = vunpack.c.h.b16 %v748
        %v859 = vunpack.c.l.b16 %v749
        %v860 = vunpack.c.h.b16 %v749
        %v861 = vunpack.c.l.b16 %v750
        %v862 = vunpack.c.h.b16 %v750
        %v863 = vunpack.c.l.b16 %v751
        %v864 = vunpack.c.h.b16 %v751
        %v865 = vunpack.c.l.b16 %v752
        %v866 = vunpack.c.h.b16 %v752
        %v867 = vunpack.c.l.b16 %v753
        %v868 = vunpack.c.h.b16 %v753
        %v869 = vunpack.c.l.b16 %v754
        %v870 = vunpack.c.h.b16 %v754
        %v871 = vunpack.c.l.b16 %v755
        %v872 = vunpack.c.h.b16 %v755
        %v873 = vunpack.c.l.b16 %v756
        %v874 = vunpack.c.h.b16 %v756
        %v875 = vunpack.c.l.b16 %v757
        %v876 = vunpack.c.h.b16 %v757
        %v877 = vunpack.c.l.b16 %v758
        %v878 = vunpack.c.h.b16 %v758
        %v879 = vunpack.c.l.b16 %v759
        %v880 = vunpack.c.h.b16 %v759
        %v881 = vunpack.c.l.b16 %v760
        %v882 = vunpack.c.h.b16 %v760
        %v883 = vunpack.c.l.b16 %v761
        %v884 = vunpack.c.h.b16 %v761
        %v885 = vunpack.c.l.b16 %v762
        %v886 = vunpack.c.h.b16 %v762
        %v887 = vunpack.c.l.b16 %v763
        %v888 = vunpack.c.h.b16 %v763
        %v889 = vunpack.c.l.b16 %v764
        %v890 = vunpack.c.h.b16 %v764
        %v891 = vunpack.c.l.b16 %v765
        %v892 = vunpack.c.h.b16 %v765
        %v893 = vunpack.c.l.b16 %v766
        %v894 = vunpack.c.h.b16 %v766
        %v895 = vunpack.c.l.b16 %v767
        %v896 = vunpack.c.h.b16 %v767
        %v897 = vunpack.c.l.b16 %v768
        %v898 = vunpack.c.h.b16 %v768
        %v899 = vunpack.c.l.b16 %v769
        %v900 = vunpack.c.h.b16 %v769
        %v901 = vunpack.c.l.b16 %v770
        %v902 = vunpack.c.h.b16 %v770
        %v903 = vunpack.c.l.b16 %v771
        %v904 = vunpack.c.h.b16 %v771
        %v905 = vunpack.c.l.b16 %v772
        %v906 = vunpack.c.h.b16 %v772
        %v907 = vunpack.c.l.b16 %v773
        %v908 = vunpack.c.h.b16 %v773
        %v909 = vunpack.c.l.b16 %v774
        %v910 = vunpack.c.h.b16 %v774
        %v911 = vunpack.c.l.b16 %v775
        %v912 = vunpack.c.h.b16 %v775
        %v913 = vunpack.c.l.b16 %v776
        %v914 = vunpack.c.h.b16 %v776
        %v915 = vunpack.c.l.b16 %v777
        %v916 = vunpack.c.h.b16 %v777
        %v917 = vunpack.c.l.b16 %v778
        %v918 = vunpack.c.h.b16 %v778
        %v919 = vunpack.c.l.b16 %v779
        %v920 = vunpack.c.h.b16 %v779
        %v921 = vunpack.c.l.b16 %v780
        %v922 = vunpack.c.h.b16 %v780
        %v923 = vunpack.c.l.b16 %v781
        %v924 = vunpack.c.h.b16 %v781
        %v925 = vunpack.c.l.b16 %v782
        %v926 = vunpack.c.h.b16 %v782
        %v927 = vpack.c.b16 %v837, %v831
        %v928 = vpack.c.b16 %v838, %v832
        %v929 = vpack.c.b16 %v839, %v833
        %v930 = vpack.c.b16 %v840, %v834
        %v931 = vpack.c.b16 %v841, %v835
        %v932 = vpack.c.b16 %v842, %v836
        %v933 = vpack.c.b16 %v849, %v843
        %v934 = vpack.c.b16 %v850, %v844
        %v935 = vpack.c.b16 %v851, %v845
        %v936 = vpack.c.b16 %v852, %v846
        %v937 = vpack.c.b16 %v853, %v847
        %v938 = vpack.c.b16 %v854, %v848
        %v939 = vpack.c.b16 %v861, %v855
        %v940 = vpack.c.b16 %v862, %v856
        %v941 = vpack.c.b16 %v863, %v857
        %v942 = vpack.c.b16 %v864, %v858
        %v943 = vpack.c.b16 %v865, %v859
        %v944 = vpack.c.b16 %v866, %v860
        %v945 = vpack.c.b16 %v873, %v867
        %v946 = vpack.c.b16 %v874, %v868
        %v947 = vpack.c.b16 %v875, %v869
        %v948 = vpack.c.b16 %v876, %v870
        %v949 = vpack.c.b16 %v877, %v871
        %v950 = vpack.c.b16 %v878, %v872
        %v951 = vpack.c.b16 %v885, %v879
        %v952 = vpack.c.b16 %v886, %v880
        %v953 = vpack.c.b16 %v887, %v881
        %v954 = vpack.c.b16 %v888, %v882
        %v955 = vpack.c.b16 %v889, %v883
        %v956 = vpack.c.b16 %v890, %v884
        %v957 = vpack.c.b16 %v897, %v891
        %v958 = vpack.c.b16 %v898, %v892
        %v959 = vpack.c.b16 %v899, %v893
        %v960 = vpack.c.b16 %v900, %v894
        %v961 = vpack.c.b16 %v901, %v895
        %v962 = vpack.c.b16 %v902, %v896
        %v963 = vpack.c.b16 %v909, %v903
        %v964 = vpack.c.b16 %v910, %v904
        %v965 = vpack.c.b16 %v911, %v905
        %v966 = vpack.c.b16 %v912, %v906
        %v967 = vpack.c.b16 %v913, %v907
        %v968 = vpack.c.b16 %v914, %v908
        %v969 = vpack.c.b16 %v921, %v915
        %v970 = vpack.c.b16 %v922, %v916
        %v971 = vpack.c.b16 %v923, %v917
        %v972 = vpack.c.b16 %v924, %v918
        %v973 = vpack.c.b16 %v925, %v919
        %v974 = vpack.c.b16 %v926, %v920
        %1023 = vmatprep.subr.bf16.mxu0 %v928
        %1024 = vmatpush1.bf16.msra.mxu0 %v927
        %1025 = vmatprep.subr.bf16.mxu0 %v934
        %1026 = vmatpush1.bf16.msra.mxu0 %v933
        %1027 = vmatprep.subr.bf16.mxu0 %v940
        %1028 = vmatpush1.bf16.msra.mxu0 %v939
        %1029 = vmatprep.subr.bf16.mxu0 %v946
        %1030 = vmatpush1.bf16.msra.mxu0 %v945
        %1031 = vmatprep.subr.bf16.mxu0 %v952
        %1032 = vmatpush1.bf16.msra.mxu0 %v951
        %1033 = vmatprep.subr.bf16.mxu0 %v958
        %1034 = vmatpush1.bf16.msra.mxu0 %v957
        %1035 = vmatprep.subr.bf16.mxu0 %v964
        %1036 = vmatpush1.bf16.msra.mxu0 %v963
        %1037 = vmatprep.subr.bf16.mxu0 %v970
        %1038 = vmatpush1.bf16.msra.mxu0 %v969
        %1039 = vmatprep.subr.bf16.mxu0 0
        %1040 = vmatpush1.bf16.msra.mxu0 0
        %1041 = vmatprep.subr.bf16.mxu0 0
        %1042 = vmatpush1.bf16.msra.mxu0 0
        %1043 = vmatprep.subr.bf16.mxu0 0
        %1044 = vmatpush1.bf16.msra.mxu0 0
        %1045 = vmatprep.subr.bf16.mxu0 0
        %1046 = vmatpush1.bf16.msra.mxu0 0
        %1047 = vmatprep.subr.bf16.mxu0 0
        %1048 = vmatpush1.bf16.msra.mxu0 0
        %1049 = vmatprep.subr.bf16.mxu0 0
        %1050 = vmatpush1.bf16.msra.mxu0 0
        %1051 = vmatprep.subr.bf16.mxu0 0
        %1052 = vmatpush1.bf16.msra.mxu0 0
        %1053 = vmatprep.subr.bf16.mxu0 0
        %1054 = vmatpush1.bf16.msra.mxu0 0
        %1055 = vmatprep.mubr.bf16.mxu0 0
        %1056 = vmatmul.mubr.bf16.gmra.mrb[0].mxu0 %v734
        %v1057 = vpop.f32.mrb[0].mxu0
        %v1058 = vadd.f32 0.0, %v1057
        %v1059 = vpop.f32.mrb[0].mxu0
        %v1060 = vadd.f32 0.0, %v1059
        %v1061 = vpop.f32.mrb[0].mxu0
        %v1062 = vpop.f32.mrb[0].mxu0
        %1063 = vdwg.mxu0
        %1064 = vmatprep.subr.bf16.mxu0 %v930
        %1065 = vmatpush1.bf16.msra.mxu0 %v929
        %1066 = vmatprep.subr.bf16.mxu0 %v936
        %1067 = vmatpush1.bf16.msra.mxu0 %v935
        %1068 = vmatprep.subr.bf16.mxu0 %v942
        %1069 = vmatpush1.bf16.msra.mxu0 %v941
        %1070 = vmatprep.subr.bf16.mxu0 %v948
        %1071 = vmatpush1.bf16.msra.mxu0 %v947
        %1072 = vmatprep.subr.bf16.mxu0 %v954
        %1073 = vmatpush1.bf16.msra.mxu0 %v953
        %1074 = vmatprep.subr.bf16.mxu0 %v960
        %1075 = vmatpush1.bf16.msra.mxu0 %v959
        %1076 = vmatprep.subr.bf16.mxu0 %v966
        %1077 = vmatpush1.bf16.msra.mxu0 %v965
        %1078 = vmatprep.subr.bf16.mxu0 %v972
        %1079 = vmatpush1.bf16.msra.mxu0 %v971
        %1080 = vmatprep.subr.bf16.mxu0 0
        %1081 = vmatpush1.bf16.msra.mxu0 0
        %1082 = vmatprep.subr.bf16.mxu0 0
        %1083 = vmatpush1.bf16.msra.mxu0 0
        %1084 = vmatprep.subr.bf16.mxu0 0
        %1085 = vmatpush1.bf16.msra.mxu0 0
        %1086 = vmatprep.subr.bf16.mxu0 0
        %1087 = vmatpush1.bf16.msra.mxu0 0
        %1088 = vmatprep.subr.bf16.mxu0 0
        %1089 = vmatpush1.bf16.msra.mxu0 0
        %1090 = vmatprep.subr.bf16.mxu0 0
        %1091 = vmatpush1.bf16.msra.mxu0 0
        %1092 = vmatprep.subr.bf16.mxu0 0
        %1093 = vmatpush1.bf16.msra.mxu0 0
        %1094 = vmatprep.subr.bf16.mxu0 0
        %1095 = vmatpush1.bf16.msra.mxu0 0
        %1096 = vmatprep.mubr.bf16.mxu0 0
        %1097 = vmatmul.mubr.bf16.gmra.mrb[0].mxu0 %v734
        %v1098 = vpop.f32.mrb[0].mxu0
        %v1099 = vadd.f32 0.0, %v1098
        %v1100 = vpop.f32.mrb[0].mxu0
        %v1101 = vadd.f32 0.0, %v1100
        %v1102 = vpop.f32.mrb[0].mxu0
        %v1103 = vpop.f32.mrb[0].mxu0
        %1104 = vdwg.mxu0
        %1105 = vmatprep.subr.bf16.mxu0 %v932
        %1106 = vmatpush1.bf16.msra.mxu0 %v931
        %1107 = vmatprep.subr.bf16.mxu0 %v938
        %1108 = vmatpush1.bf16.msra.mxu0 %v937
        %1109 = vmatprep.subr.bf16.mxu0 %v944
        %1110 = vmatpush1.bf16.msra.mxu0 %v943
        %1111 = vmatprep.subr.bf16.mxu0 %v950
        %1112 = vmatpush1.bf16.msra.mxu0 %v949
        %1113 = vmatprep.subr.bf16.mxu0 %v956
        %1114 = vmatpush1.bf16.msra.mxu0 %v955
        %1115 = vmatprep.subr.bf16.mxu0 %v962
        %1116 = vmatpush1.bf16.msra.mxu0 %v961
        %1117 = vmatprep.subr.bf16.mxu0 %v968
        %1118 = vmatpush1.bf16.msra.mxu0 %v967
        %1119 = vmatprep.subr.bf16.mxu0 %v974
        %1120 = vmatpush1.bf16.msra.mxu0 %v973
        %1121 = vmatprep.subr.bf16.mxu0 0
        %1122 = vmatpush1.bf16.msra.mxu0 0
        %1123 = vmatprep.subr.bf16.mxu0 0
        %1124 = vmatpush1.bf16.msra.mxu0 0
        %1125 = vmatprep.subr.bf16.mxu0 0
        %1126 = vmatpush1.bf16.msra.mxu0 0
        %1127 = vmatprep.subr.bf16.mxu0 0
        %1128 = vmatpush1.bf16.msra.mxu0 0
        %1129 = vmatprep.subr.bf16.mxu0 0
        %1130 = vmatpush1.bf16.msra.mxu0 0
        %1131 = vmatprep.subr.bf16.mxu0 0
        %1132 = vmatpush1.bf16.msra.mxu0 0
        %1133 = vmatprep.subr.bf16.mxu0 0
        %1134 = vmatpush1.bf16.msra.mxu0 0
        %1135 = vmatprep.subr.bf16.mxu0 0
        %1136 = vmatpush1.bf16.msra.mxu0 0
        %1137 = vmatprep.mubr.bf16.mxu0 0
        %1138 = vmatmul.mubr.bf16.gmra.mrb[0].mxu0 %v734
        %v1139 = vpop.f32.mrb[0].mxu0
        %v1140 = vadd.f32 0.0, %v1139
        %v1141 = vpop.f32.mrb[0].mxu0
        %v1142 = vadd.f32 0.0, %v1141
        %v1143 = vpop.f32.mrb[0].mxu0
        %v1144 = vpop.f32.mrb[0].mxu0
        %1145 = vdwg.mxu0
        %1146 = vst [vmem:[%s215] sm:$0xff] %v1058
        %1147 = vst [vmem:[%s215 + $0x8] sm:$0xff] %v1060
        %1148 = vst [vmem:[%s215 + $0x10] sm:$0xff] %v1099
        %1149 = vst [vmem:[%s215 + $0x18] sm:$0xff] %v1101
        %1150 = vst [vmem:[%s215 + $0x20] sm:$0xff] %v1140
        %1151 = vst [vmem:[%s215 + $0x28] sm:$0xff] %v1142
        %s1152 = sand.u32 %s97, 1
        %s1153 = scalar_lea.sflag [#allocation4], %s1152
        %s1154 = sand.u32 %s97, 1
        %s1155 = smul.addr %s1154, 48
        %s1156 = scalar_lea.vmem [#allocation8], %s1155
        // Predicated region
        $region45: #{tpu_custom_call.1} parent=31 // pred_check
          %p1157 = pneg %p107
        $region46: #{tpu_custom_call.1} parent=31 // pred_check_branch
          %1159 = sbr.rel (%p1157) target = $region48
        $region47: #{tpu_custom_call.1} parent=31 // pred_region
          %s1161 = ssub.s32 768, 768
          %1162 = vsyncadd %s1153, %s1161
          %s1163 = smul.addr %s21, 6
          %s1164 = smul.addr %s1163, 128
          %s1165 = scalar_lea.hbm %s3, %s1164
          %s1167 = sshll.u32 %s1156, 4
          %s1168 = int_to_ptr.vmem [resolvable:$true] %s1167
          %1170 = dma.vmem_to_hbm [thread:$0]  %s1168, 768, %s1165, %s1153
        $region48: #{tpu_custom_call.1} parent=31 // pred_fallthru
          _
      $region32: #{tpu_custom_call.1} parent=5 // pred_fallthru
        _
      %p1171 = scmp.le.s32.totalorder 2, %s16
      // Predicated region
      $region49: #{tpu_custom_call.1} parent=5 // pred_check
        %p1172 = pneg %p1171
      $region50: #{tpu_custom_call.1} parent=5 // pred_check_branch
        %1174 = sbr.rel (%p1172) target = $region52
      $region51: #{tpu_custom_call.1} parent=5 // pred_region
        %s1175 = ssub.s32 %s16, 2
        // Predicated region
        $region53: #{tpu_custom_call.1} parent=51 // pred_check
          %p1176 = pneg %p113
        $region54: #{tpu_custom_call.1} parent=51 // pred_check_branch
          %1178 = sbr.rel (%p1176) target = $region56
        $region55: #{tpu_custom_call.1} parent=51 // pred_region
          %s1179 = sand.u32 %s98, 1
          %s1180 = scalar_lea.sflag [#allocation4], %s1179
          %s1181 = sand.u32 %s98, 1
          %s1182 = smul.addr %s1181, 48
          %s1183 = scalar_lea.vmem [#allocation8], %s1182
          %1184 = dma.done %s1180, 768
        $region56: #{tpu_custom_call.1} parent=51 // pred_fallthru
          _
      $region52: #{tpu_custom_call.1} parent=5 // pred_fallthru
        _
    $region6: #{tpu_custom_call.1} parent=1 // loop_footer
      %s20 = sadd.s32 1, %s16
    $region7: #{tpu_custom_call.1} parent=1 // loop_footer_branch
      %15 = sbr.rel target = $region3
    $region8: #{tpu_custom_call.1} parent=1 // loop_exit
      _
    %1185 = vsyncpa [#allocation3], 1
    %s1186 = scalar_lea.sflag [#allocation3], 1
    %1187 = vsyncpa %s1186, 1
    %1188 = vsyncpa [#allocation6], 1
    %1189 = vsyncpa [#allocation4], 1
    %s1190 = scalar_lea.sflag [#allocation4], 1
    %1191 = vsyncpa %s1190, 1

</llo_original>
